<compile_context>
chip_gen: v7x
topology: tpu7x:2x2x1
jax: 0.10.0
libtpu: 0.0.40
codegen_flags: <defaults>
</compile_context>

<pallas_src>
import functools

import jax
import jax.numpy as jnp
import numpy as np
from jax.experimental import pallas as pl
from jax.experimental.pallas import tpu as pltpu


_LANE = 128        # TPU lane width (last-dim tiling)
_TIME_PAD = 16     # time padded to a multiple of 16 (bf16 sublane packing; also /8 for f32)
_ROW_TILE = 512    # row tile for the fused dnn / projection kernel


def _round_up(n, m):
    return ((n + m - 1) // m) * m


def _physical_vmem_bytes():
    try:
        return int(pltpu.get_tpu_info().vmem_capacity_bytes)
    except Exception:
        return 64 << 20          # conservative default (v7x per-TensorCore VMEM)


def _compiler_params(io_block_bytes, const_bytes, semantics):
    """Derive vmem_limit_bytes from actual block sizes (double-buffered) + weights."""
    phys = _physical_vmem_bytes()
    est = 2 * int(io_block_bytes) + 2 * int(const_bytes) + (4 << 20)
    limit = min(max(est, 32 << 20), phys - (8 << 20))
    return pltpu.CompilerParams(dimension_semantics=semantics,
                                vmem_limit_bytes=int(limit))


def _nbytes(*arrs):
    return sum(int(a.size) * a.dtype.itemsize for a in arrs)


# ----------------------------------------------------------------------------
# Shared FFN block (conv1d k=1 -> LayerNorm -> ReLU -> conv1d k=1) on a row tile.
# Hidden / output feature dims may be zero-padded to a multiple of 128; the
# LayerNorm statistics are taken over the true `h_true` columns (padded columns
# of `h` are exactly zero and padded gamma/beta are zero, so they stay zero).
# Matmuls run on the MXU in bf16 with f32 accumulation.
# ----------------------------------------------------------------------------
def _ffn_block(x, w1, b1, g, be, w2, b2, h_true):
    h = jnp.dot(x.astype(jnp.bfloat16), w1,
                preferred_element_type=jnp.float32) + b1
    n_pad = h.shape[-1] - h_true
    inv_h = 1.0 / float(h_true)
    mean = jnp.sum(h, axis=-1, keepdims=True) * inv_h
    c = h - mean
    # padded columns contribute exactly n_pad * mean^2 to sum(c*c); remove it.
    var = (jnp.sum(c * c, axis=-1, keepdims=True) - n_pad * mean * mean) * inv_h
    hn = c * jax.lax.rsqrt(var + 1e-5) * g + be            # nn.LayerNorm eps = 1e-5
    hr = jnp.maximum(hn, 0.0)                              # ReLU
    return jnp.dot(hr.astype(jnp.bfloat16), w2,
                   preferred_element_type=jnp.float32) + b2


# ----------------------------------------------------------------------------
# Fused FSMN layer: FFN + FsmnBlock (masked depthwise time conv + residual +
# re-mask) + EncoderLayer residual.  One grid step per batch element.
# The depthwise conv is computed with in-register sublane rolls (XLU) instead
# of a VMEM pad-scratch; the valid-frame mask is a (T,1) column from ilens.
# ----------------------------------------------------------------------------
def _fsmn_layer_kernel(ilens_ref, x_ref, w1_ref, b1_ref, g_ref, be_ref,
                       w2_ref, b2_ref, cw_ref, o_ref, *,
                       h_true, K, left_pad, add_residual):
    b = pl.program_id(0)
    x = x_ref[0]                                   # (T_p, Din_p) bf16
    T = x.shape[0]

    # (T,1) valid-frame column mask from scalar-prefetched ilens (SMEM).
    t_col = jax.lax.broadcasted_iota(jnp.int32, (T, 1), 0)
    mask = (t_col < ilens_ref[b]).astype(jnp.float32)       # (T, 1)

    # FsmnFeedForward (f32 result).
    ctx = _ffn_block(x, w1_ref[...], b1_ref[...], g_ref[...], be_ref[...],
                     w2_ref[...], b2_ref[...], h_true)       # (T, D) f32

    # FsmnBlock: mask inputs, depthwise time conv via rolls, residual, re-mask.
    cm = ctx * mask                                          # (T, D) f32
    w = cw_ref[...]                                          # (K, D) f32, loaded once
    acc = cm                                                 # FsmnBlock residual folded in
    for k in range(K):                                       # small static K -> unrolled
        d = k - left_pad                                     # time offset of this tap
        if d == 0:
            tap = cm
        else:
            # rolled[t] = cm[(t + d) mod T]; shift is a static non-negative int.
            rolled = pltpu.roll(cm, shift=(-d) % T, axis=0)
            if d > 0:                                        # drop wrapped tail rows
                valid = (t_col < T - d).astype(jnp.float32)
            else:                                            # drop wrapped head rows
                valid = (t_col >= -d).astype(jnp.float32)
            tap = rolled * valid
        acc = acc + tap * w[k:k + 1, :]
    mem = acc * mask

    if add_residual:                                         # EncoderLayer: in_size == size
        mem = mem + x.astype(jnp.float32)
    o_ref[0] = mem.astype(o_ref.dtype)


def _fsmn_layer_forward(h, ilens, layer_params, cfg, shift, add_residual):
    """h: (B, T_p, Din_p) bf16 -> (B, T_p, D_p) bf16, one fused kernel per layer."""
    B, T_p, Din_p = h.shape
    w1, b1, g, be, w2, b2 = layer_params["ffn"]
    cw = layer_params["memory"]
    H_p = w1.shape[1]
    D_p = w2.shape[1]
    K = cfg["filter_size"]
    left_pad = (K - 1) // 2
    if shift > 0:
        left_pad += shift
    assert K - 1 - left_pad >= 0, "shift too large for filter_size"

    kernel = functools.partial(
        _fsmn_layer_kernel, h_true=cfg["ffn_inner_dim"], K=K,
        left_pad=left_pad, add_residual=add_residual)

    grid_spec = pltpu.PrefetchScalarGridSpec(
        num_scalar_prefetch=1,                      # ilens -> SMEM
        grid=(B,),
        in_specs=[
            pl.BlockSpec((1, T_p, Din_p), lambda b, il: (b, 0, 0)),
            pl.BlockSpec((Din_p, H_p), lambda b, il: (0, 0)),
            pl.BlockSpec((1, H_p), lambda b, il: (0, 0)),
            pl.BlockSpec((1, H_p), lambda b, il: (0, 0)),
            pl.BlockSpec((1, H_p), lambda b, il: (0, 0)),
            pl.BlockSpec((H_p, D_p), lambda b, il: (0, 0)),
            pl.BlockSpec((1, D_p), lambda b, il: (0, 0)),
            pl.BlockSpec((K, D_p), lambda b, il: (0, 0)),
        ],
        out_specs=pl.BlockSpec((1, T_p, D_p), lambda b, il: (b, 0, 0)),
    )
    io_bytes = T_p * Din_p * 2 + T_p * D_p * 2      # bf16 in-block + bf16 out-block
    const_bytes = _nbytes(w1, b1, g, be, w2, b2, cw)
    return pl.pallas_call(
        kernel,
        out_shape=jax.ShapeDtypeStruct((B, T_p, D_p), jnp.bfloat16),
        grid_spec=grid_spec,
        compiler_params=_compiler_params(io_bytes, const_bytes, ("parallel",)),
    )(ilens, h, w1, b1, g, be, w2, b2, cw)


# ----------------------------------------------------------------------------
# Fused dnn stack: all FsmnFeedForward dnn layers + final 1x1-conv projection
# in a single row-tiled kernel (weights are tiny; rows are purely row-local).
# ----------------------------------------------------------------------------
def _dnn_stack_kernel(x_ref, *refs, n_dnn, h_true):
    o_ref = refs[-1]
    prm = refs[:-1]
    y = x_ref[...]                                  # (tm, D_p) bf16
    for l in range(n_dnn):
        w1, b1, g, be, w2, b2 = prm[6 * l:6 * l + 6]
        y = _ffn_block(y, w1[...], b1[...], g[...], be[...], w2[...], b2[...],
                       h_true)
    wo = prm[6 * n_dnn][...]
    bo = prm[6 * n_dnn + 1][...]
    o_ref[...] = jnp.dot(y.astype(jnp.bfloat16), wo,
                         preferred_element_type=jnp.float32) + bo


def _dnn_stack_forward(rows, dnn_params, out_w, out_b, h_true, tm):
    N, Din_p = rows.shape
    n_dnn = len(dnn_params)
    O_p = out_w.shape[1]

    in_specs = [pl.BlockSpec((tm, Din_p), lambda i: (i, 0))]
    args = [rows]
    for p in dnn_params:
        w1, b1, g, be, w2, b2 = p
        in_specs += [
            pl.BlockSpec(w1.shape, lambda i: (0, 0)),
            pl.BlockSpec(b1.shape, lambda i: (0, 0)),
            pl.BlockSpec(g.shape, lambda i: (0, 0)),
            pl.BlockSpec(be.shape, lambda i: (0, 0)),
            pl.BlockSpec(w2.shape, lambda i: (0, 0)),
            pl.BlockSpec(b2.shape, lambda i: (0, 0)),
        ]
        args += [w1, b1, g, be, w2, b2]
    in_specs += [pl.BlockSpec(out_w.shape, lambda i: (0, 0)),
                 pl.BlockSpec(out_b.shape, lambda i: (0, 0))]
    args += [out_w, out_b]

    io_bytes = tm * Din_p * rows.dtype.itemsize + tm * O_p * 4
    const_bytes = _nbytes(*args[1:])
    return pl.pallas_call(
        functools.partial(_dnn_stack_kernel, n_dnn=n_dnn, h_true=h_true),
        out_shape=jax.ShapeDtypeStruct((N, O_p), jnp.float32),
        grid=(N // tm,),
        in_specs=in_specs,
        out_specs=pl.BlockSpec((tm, O_p), lambda i: (i, 0)),
        compiler_params=_compiler_params(io_bytes, const_bytes, ("parallel",)),
    )(*args)


# ----------------------------------------------------------------------------
# Parameter construction (deterministic, synthetic — matches module shapes).
# Matmul weights are stored as bf16 (MXU inputs); everything else stays f32.
# ----------------------------------------------------------------------------
def init_params(key, cfg):
    in_u = cfg["in_units"]
    mem = cfg["num_memory_units"]
    ffn_h = cfg["ffn_inner_dim"]
    K = cfg["filter_size"]
    out_u = cfg["out_units"]

    def ffn_params(k, din):
        k1, k2, k3, k4, k5, k6 = jax.random.split(k, 6)
        w1 = (jax.random.normal(k1, (din, ffn_h), jnp.float32)
              / np.sqrt(din)).astype(jnp.bfloat16)
        b1 = 0.1 * jax.random.normal(k2, (1, ffn_h), jnp.float32)
        g = 1.0 + 0.1 * jax.random.normal(k3, (1, ffn_h), jnp.float32)
        be = 0.1 * jax.random.normal(k4, (1, ffn_h), jnp.float32)
        w2 = (jax.random.normal(k5, (ffn_h, mem), jnp.float32)
              / np.sqrt(ffn_h)).astype(jnp.bfloat16)
        b2 = 0.1 * jax.random.normal(k6, (1, mem), jnp.float32)
        return (w1, b1, g, be, w2, b2)

    keys = jax.random.split(key, 2 * cfg["fsmn_num_layers"] + cfg["dnn_num_layers"] + 2)
    ki = 0
    params = {"fsmn": [], "dnn": []}
    for l in range(cfg["fsmn_num_layers"]):
        din = in_u if l == 0 else mem
        ffn_p = ffn_params(keys[ki], din)
        ki += 1
        # depthwise conv weight: torch shape (D, 1, K) stored transposed as (K, D)
        mem_w = jax.random.normal(keys[ki], (K, mem), jnp.float32) / np.sqrt(K)
        ki += 1
        params["fsmn"].append({"ffn": ffn_p, "memory": mem_w})
    for _ in range(cfg["dnn_num_layers"]):
        params["dnn"].append(ffn_params(keys[ki], mem))
        ki += 1
    params["out_w"] = (jax.random.normal(keys[ki], (mem, out_u), jnp.float32)
                       / np.sqrt(mem)).astype(jnp.bfloat16)
    ki += 1
    params["out_b"] = 0.01 * jax.random.normal(keys[ki], (1, out_u), jnp.float32)
    return params


def pad_params(params, cfg):
    """Zero-pad every feature dimension up to a lane-dense multiple of 128."""
    in_p = _round_up(cfg["in_units"], _LANE)
    mem_p = _round_up(cfg["num_memory_units"], _LANE)
    ffn_p = _round_up(cfg["ffn_inner_dim"], _LANE)
    out_p = _round_up(cfg["out_units"], _LANE)

    def pad2(a, rows, cols):
        return jnp.pad(a, ((0, rows - a.shape[0]), (0, cols - a.shape[1])))

    def pad_ffn(p, din_p):
        w1, b1, g, be, w2, b2 = p
        # gamma/beta padded with zeros so padded hidden columns stay exactly zero.
        return (pad2(w1, din_p, ffn_p), pad2(b1, 1, ffn_p), pad2(g, 1, ffn_p),
                pad2(be, 1, ffn_p), pad2(w2, ffn_p, mem_p), pad2(b2, 1, mem_p))

    out = {"fsmn": [], "dnn": []}
    for l, lp in enumerate(params["fsmn"]):
        din_p = in_p if l == 0 else mem_p
        out["fsmn"].append({
            "ffn": pad_ffn(lp["ffn"], din_p),
            "memory": pad2(lp["memory"], lp["memory"].shape[0], mem_p),
        })
    for dp in params["dnn"]:
        out["dnn"].append(pad_ffn(dp, mem_p))
    out["out_w"] = pad2(params["out_w"], mem_p, out_p)
    out["out_b"] = pad2(params["out_b"], 1, out_p)
    return out


# ----------------------------------------------------------------------------
# Full FsmnEncoder forward.
# ----------------------------------------------------------------------------
def fsmn_encoder_forward(xs_pad, ilens, padded_params, cfg):
    B, T, Din = xs_pad.shape
    mem = cfg["num_memory_units"]
    in_p = _round_up(cfg["in_units"], _LANE)
    mem_p = _round_up(mem, _LANE)
    out_p = _round_up(cfg["out_units"], _LANE)
    T_p = _round_up(T, _TIME_PAD)

    shift = cfg["shift"]
    if not isinstance(shift, (list, tuple)):
        shift = [shift] * cfg["fsmn_num_layers"]

    ilens = ilens.astype(jnp.int32)
    # zero-pad time / features; inter-layer activations travel as bf16.
    h = jnp.pad(xs_pad.astype(jnp.float32),
                ((0, 0), (0, T_p - T), (0, in_p - Din))).astype(jnp.bfloat16)

    # fsmn layers: one fused kernel (FFN + FsmnBlock + residual) per layer.
    for l in range(cfg["fsmn_num_layers"]):
        in_size = cfg["in_units"] if l == 0 else mem
        h = _fsmn_layer_forward(h, ilens, padded_params["fsmn"][l], cfg,
                                shift=shift[l], add_residual=(in_size == mem))

    # dnn layers + final projection: one fused row-tiled lane-dense kernel.
    N = B * T_p
    rows = h.reshape(N, mem_p)
    tm = _ROW_TILE if N >= _ROW_TILE else N         # N is a multiple of 16 by construction
    n_rows = _round_up(N, tm)
    if n_rows != N:
        rows = jnp.pad(rows, ((0, n_rows - N), (0, 0)))
    assert len(padded_params["dnn"]) >= 1, "dnn_num_layers must be >= 1"
    out_rows = _dnn_stack_forward(rows, padded_params["dnn"],
                                  padded_params["out_w"], padded_params["out_b"],
                                  cfg["ffn_inner_dim"], tm)
    out = out_rows[:N].reshape(B, T_p, out_p)[:, :T, :cfg["out_units"]]
    return out, ilens, None


# ----------------------------------------------------------------------------
# Pure-JAX reference (f32 activations; bf16 weights upcast) for correctness.
# ----------------------------------------------------------------------------
def reference_forward(xs_pad, ilens, params, cfg):
    B, T, _ = xs_pad.shape
    mask = (jnp.arange(T)[None, :] < ilens[:, None]).astype(jnp.float32)[:, :, None]
    shift = cfg["shift"]
    if not isinstance(shift, (list, tuple)):
        shift = [shift] * cfg["fsmn_num_layers"]

    def ffn_ref(h, p):
        w1, b1, g, be, w2, b2 = p
        z = h @ w1.astype(jnp.float32) + b1[0]
        mu = z.mean(-1, keepdims=True)
        var = ((z - mu) ** 2).mean(-1, keepdims=True)
        z = (z - mu) / jnp.sqrt(var + 1e-5) * g[0] + be[0]
        z = jnp.maximum(z, 0.0)
        return z @ w2.astype(jnp.float32) + b2[0]

    def fsmn_ref(c, w, K, sh):
        left = (K - 1) // 2 + (sh if sh > 0 else 0)
        right = K - 1 - left
        cm = c * mask
        pad = jnp.pad(cm, ((0, 0), (left, right), (0, 0)))
        y = jnp.zeros_like(cm)
        for k in range(K):
            y = y + pad[:, k:k + T, :] * w[k]
        return (y + cm) * mask

    h = xs_pad.astype(jnp.float32)
    for l in range(cfg["fsmn_num_layers"]):
        lp = params["fsmn"][l]
        c = ffn_ref(h, lp["ffn"])
        m = fsmn_ref(c, lp["memory"], cfg["filter_size"], shift[l])
        in_size = cfg["in_units"] if l == 0 else cfg["num_memory_units"]
        h = m + h if in_size == cfg["num_memory_units"] else m
    for dp in params["dnn"]:
        h = ffn_ref(h, dp)
    return h @ params["out_w"].astype(jnp.float32) + params["out_b"][0]


if __name__ == "__main__":
    # Small config consistent with FsmnEncoder's constructor (scaled-down defaults);
    # deliberately uses non-128-multiple feature dims and a non-multiple-of-16 T to
    # exercise the lane-dense / sublane padding paths.
    cfg = {
        "in_units": 64,
        "filter_size": 7,
        "fsmn_num_layers": 2,
        "dnn_num_layers": 2,
        "num_memory_units": 128,
        "ffn_inner_dim": 96,
        "out_units": 48,
        "shift": [0, 1],
    }
    B, T = 2, 30

    key = jax.random.PRNGKey(0)
    kx, kp = jax.random.split(key)
    xs_pad = jax.random.normal(kx, (B, T, cfg["in_units"]), jnp.float32)
    ilens = jnp.array([30, 22], dtype=jnp.int32)

    params = init_params(kp, cfg)
    padded = pad_params(params, cfg)

    out, out_ilens, _ = fsmn_encoder_forward(xs_pad, ilens, padded, cfg)
    out = jax.block_until_ready(out)
    assert out.shape == (B, T, cfg["out_units"])

    ref = reference_forward(xs_pad, ilens, params, cfg)
    # Kernel uses bf16 matmul inputs and bf16 inter-layer activations (f32 accumulation);
    # allow a few percent slack against the pure-f32 reference.
    np.testing.assert_allclose(np.asarray(out), np.asarray(ref), rtol=5e-2, atol=8e-2)

    print("KERNEL_OK")
</pallas_src>

<mosaic_0001>
module attributes {stable_mosaic.version = 11 : i64} {
  func.func @_fsmn_layer_kernel(%arg0: i32, %arg1: memref<2xi32, #tpu.memory_space<smem>>, %arg2: memref<1x32x128xbf16, #tpu.memory_space<vmem>>, %arg3: memref<128x128xbf16, #tpu.memory_space<vmem>>, %arg4: memref<1x128xf32, #tpu.memory_space<vmem>>, %arg5: memref<1x128xf32, #tpu.memory_space<vmem>>, %arg6: memref<1x128xf32, #tpu.memory_space<vmem>>, %arg7: memref<128x128xbf16, #tpu.memory_space<vmem>>, %arg8: memref<1x128xf32, #tpu.memory_space<vmem>>, %arg9: memref<7x128xf32, #tpu.memory_space<vmem>>, %arg10: memref<1x32x128xbf16, #tpu.memory_space<vmem>>) attributes {dimension_semantics = [#tpu.dimension_semantics<parallel>], iteration_bounds = array<i64: 2>, scalar_prefetch = 1 : i64, scratch_operands = 0 : i64, tpu.core_type = #tpu.core_type<tc>, window_params = [{transform_indices = @transform_0, window_bounds = array<i64: 1, 32, 128>}, {pipeline_mode = #tpu.pipeline_mode<synchronous>, transform_indices = @transform_1, window_bounds = array<i64: 128, 128>}, {pipeline_mode = #tpu.pipeline_mode<synchronous>, transform_indices = @transform_2, window_bounds = array<i64: 1, 128>}, {pipeline_mode = #tpu.pipeline_mode<synchronous>, transform_indices = @transform_3, window_bounds = array<i64: 1, 128>}, {pipeline_mode = #tpu.pipeline_mode<synchronous>, transform_indices = @transform_4, window_bounds = array<i64: 1, 128>}, {pipeline_mode = #tpu.pipeline_mode<synchronous>, transform_indices = @transform_5, window_bounds = array<i64: 128, 128>}, {pipeline_mode = #tpu.pipeline_mode<synchronous>, transform_indices = @transform_6, window_bounds = array<i64: 1, 128>}, {pipeline_mode = #tpu.pipeline_mode<synchronous>, transform_indices = @transform_7, window_bounds = array<i64: 7, 128>}, {transform_indices = @transform_8, window_bounds = array<i64: 1, 32, 128>}]} {
    %c0 = arith.constant 0 : index
    %c0_0 = arith.constant 0 : index
    %c0_1 = arith.constant 0 : index
    %0 = vector.load %arg2[%c0, %c0_0, %c0_1] : memref<1x32x128xbf16, #tpu.memory_space<vmem>>, vector<1x32x128xbf16>
    %1 = vector.shape_cast %0 : vector<1x32x128xbf16> to vector<32x128xbf16>
    %2 = tpu.iota {dimensions = array<i32: 0>} : vector<32x1xi32>
    %3 = arith.index_cast %arg0 : i32 to index
    %4 = memref.load %arg1[%3] : memref<2xi32, #tpu.memory_space<smem>>
    %5 = vector.broadcast %4 : i32 to vector<32x1xi32>
    %6 = arith.cmpi slt, %2, %5 : vector<32x1xi32>
    %7 = arith.extui %6 : vector<32x1xi1> to vector<32x1xi32>
    %8 = arith.sitofp %7 : vector<32x1xi32> to vector<32x1xf32>
    %c0_2 = arith.constant 0 : index
    %c0_3 = arith.constant 0 : index
    %9 = vector.load %arg3[%c0_2, %c0_3] : memref<128x128xbf16, #tpu.memory_space<vmem>>, vector<128x128xbf16>
    %c0_4 = arith.constant 0 : index
    %c0_5 = arith.constant 0 : index
    %10 = vector.load %arg4[%c0_4, %c0_5] : memref<1x128xf32, #tpu.memory_space<vmem>>, vector<1x128xf32>
    %c0_6 = arith.constant 0 : index
    %c0_7 = arith.constant 0 : index
    %11 = vector.load %arg5[%c0_6, %c0_7] : memref<1x128xf32, #tpu.memory_space<vmem>>, vector<1x128xf32>
    %c0_8 = arith.constant 0 : index
    %c0_9 = arith.constant 0 : index
    %12 = vector.load %arg6[%c0_8, %c0_9] : memref<1x128xf32, #tpu.memory_space<vmem>>, vector<1x128xf32>
    %c0_10 = arith.constant 0 : index
    %c0_11 = arith.constant 0 : index
    %13 = vector.load %arg7[%c0_10, %c0_11] : memref<128x128xbf16, #tpu.memory_space<vmem>>, vector<128x128xbf16>
    %c0_12 = arith.constant 0 : index
    %c0_13 = arith.constant 0 : index
    %14 = vector.load %arg8[%c0_12, %c0_13] : memref<1x128xf32, #tpu.memory_space<vmem>>, vector<1x128xf32>
    %cst = arith.constant dense<0.000000e+00> : vector<32x128xf32>
    %15 = tpu.matmul %1, %9, %cst {dimension_numbers = #tpu.dot_dimension_numbers<[1], [0], [0], [1], [0, 0, 1, 1], [], []>} : vector<32x128xbf16>, vector<128x128xbf16>, vector<32x128xf32> -> vector<32x128xf32>
    %16 = vector.broadcast %10 : vector<1x128xf32> to vector<32x128xf32>
    %17 = arith.addf %15, %16 : vector<32x128xf32>
    %cst_14 = arith.constant dense<0.000000e+00> : vector<32xf32>
    %18 = vector.multi_reduction <add>, %17, %cst_14 [1] : vector<32x128xf32> to vector<32xf32>
    %19 = vector.shape_cast %18 : vector<32xf32> to vector<32x1xf32>
    %cst_15 = arith.constant 0.010416667 : f32
    %20 = vector.broadcast %cst_15 : f32 to vector<32x1xf32>
    %21 = arith.mulf %19, %20 : vector<32x1xf32>
    %22 = vector.broadcast %21 : vector<32x1xf32> to vector<32x128xf32>
    %23 = arith.subf %17, %22 : vector<32x128xf32>
    %24 = arith.mulf %23, %23 : vector<32x128xf32>
    %cst_16 = arith.constant dense<0.000000e+00> : vector<32xf32>
    %25 = vector.multi_reduction <add>, %24, %cst_16 [1] : vector<32x128xf32> to vector<32xf32>
    %26 = vector.shape_cast %25 : vector<32xf32> to vector<32x1xf32>
    %cst_17 = arith.constant 3.200000e+01 : f32
    %27 = vector.broadcast %cst_17 : f32 to vector<32x1xf32>
    %28 = arith.mulf %27, %21 : vector<32x1xf32>
    %29 = arith.mulf %28, %21 : vector<32x1xf32>
    %30 = arith.subf %26, %29 : vector<32x1xf32>
    %cst_18 = arith.constant 0.010416667 : f32
    %31 = vector.broadcast %cst_18 : f32 to vector<32x1xf32>
    %32 = arith.mulf %30, %31 : vector<32x1xf32>
    %cst_19 = arith.constant 9.99999974E-6 : f32
    %33 = vector.broadcast %cst_19 : f32 to vector<32x1xf32>
    %34 = arith.addf %32, %33 : vector<32x1xf32>
    %35 = math.rsqrt %34 : vector<32x1xf32>
    %36 = vector.broadcast %35 : vector<32x1xf32> to vector<32x128xf32>
    %37 = arith.mulf %23, %36 : vector<32x128xf32>
    %38 = vector.broadcast %11 : vector<1x128xf32> to vector<32x128xf32>
    %39 = arith.mulf %37, %38 : vector<32x128xf32>
    %40 = vector.broadcast %12 : vector<1x128xf32> to vector<32x128xf32>
    %41 = arith.addf %39, %40 : vector<32x128xf32>
    %cst_20 = arith.constant 0.000000e+00 : f32
    %42 = vector.broadcast %cst_20 : f32 to vector<32x128xf32>
    %43 = arith.maximumf %41, %42 : vector<32x128xf32>
    %44 = arith.truncf %43 : vector<32x128xf32> to vector<32x128xbf16>
    %cst_21 = arith.constant dense<0.000000e+00> : vector<32x128xf32>
    %45 = tpu.matmul %44, %13, %cst_21 {dimension_numbers = #tpu.dot_dimension_numbers<[1], [0], [0], [1], [0, 0, 1, 1], [], []>} : vector<32x128xbf16>, vector<128x128xbf16>, vector<32x128xf32> -> vector<32x128xf32>
    %46 = vector.broadcast %14 : vector<1x128xf32> to vector<32x128xf32>
    %47 = arith.addf %45, %46 : vector<32x128xf32>
    %48 = vector.broadcast %8 : vector<32x1xf32> to vector<32x128xf32>
    %49 = arith.mulf %47, %48 : vector<32x128xf32>
    %c0_22 = arith.constant 0 : index
    %c0_23 = arith.constant 0 : index
    %50 = vector.load %arg9[%c0_22, %c0_23] : memref<7x128xf32, #tpu.memory_space<vmem>>, vector<7x128xf32>
    %c3_i32 = arith.constant 3 : i32
    %51 = tpu.dynamic_rotate %49 by %c3_i32 dim 0 : vector<32x128xf32>, i32 -> vector<32x128xf32>
    %c3_i32_24 = arith.constant 3 : i32
    %52 = vector.broadcast %c3_i32_24 : i32 to vector<32x1xi32>
    %53 = arith.cmpi sge, %2, %52 : vector<32x1xi32>
    %54 = arith.extui %53 : vector<32x1xi1> to vector<32x1xi32>
    %55 = arith.sitofp %54 : vector<32x1xi32> to vector<32x1xf32>
    %56 = vector.broadcast %55 : vector<32x1xf32> to vector<32x128xf32>
    %57 = arith.mulf %51, %56 : vector<32x128xf32>
    %58 = vector.extract_strided_slice %50 {offsets = [0, 0], sizes = [1, 128], strides = [1, 1]} : vector<7x128xf32> to vector<1x128xf32>
    %59 = vector.broadcast %58 : vector<1x128xf32> to vector<32x128xf32>
    %60 = arith.mulf %57, %59 : vector<32x128xf32>
    %61 = arith.addf %49, %60 : vector<32x128xf32>
    %c2_i32 = arith.constant 2 : i32
    %62 = tpu.dynamic_rotate %49 by %c2_i32 dim 0 : vector<32x128xf32>, i32 -> vector<32x128xf32>
    %c2_i32_25 = arith.constant 2 : i32
    %63 = vector.broadcast %c2_i32_25 : i32 to vector<32x1xi32>
    %64 = arith.cmpi sge, %2, %63 : vector<32x1xi32>
    %65 = arith.extui %64 : vector<32x1xi1> to vector<32x1xi32>
    %66 = arith.sitofp %65 : vector<32x1xi32> to vector<32x1xf32>
    %67 = vector.broadcast %66 : vector<32x1xf32> to vector<32x128xf32>
    %68 = arith.mulf %62, %67 : vector<32x128xf32>
    %69 = vector.extract_strided_slice %50 {offsets = [1, 0], sizes = [1, 128], strides = [1, 1]} : vector<7x128xf32> to vector<1x128xf32>
    %70 = vector.broadcast %69 : vector<1x128xf32> to vector<32x128xf32>
    %71 = arith.mulf %68, %70 : vector<32x128xf32>
    %72 = arith.addf %61, %71 : vector<32x128xf32>
    %c1_i32 = arith.constant 1 : i32
    %73 = tpu.dynamic_rotate %49 by %c1_i32 dim 0 : vector<32x128xf32>, i32 -> vector<32x128xf32>
    %c1_i32_26 = arith.constant 1 : i32
    %74 = vector.broadcast %c1_i32_26 : i32 to vector<32x1xi32>
    %75 = arith.cmpi sge, %2, %74 : vector<32x1xi32>
    %76 = arith.extui %75 : vector<32x1xi1> to vector<32x1xi32>
    %77 = arith.sitofp %76 : vector<32x1xi32> to vector<32x1xf32>
    %78 = vector.broadcast %77 : vector<32x1xf32> to vector<32x128xf32>
    %79 = arith.mulf %73, %78 : vector<32x128xf32>
    %80 = vector.extract_strided_slice %50 {offsets = [2, 0], sizes = [1, 128], strides = [1, 1]} : vector<7x128xf32> to vector<1x128xf32>
    %81 = vector.broadcast %80 : vector<1x128xf32> to vector<32x128xf32>
    %82 = arith.mulf %79, %81 : vector<32x128xf32>
    %83 = arith.addf %72, %82 : vector<32x128xf32>
    %84 = vector.extract_strided_slice %50 {offsets = [3, 0], sizes = [1, 128], strides = [1, 1]} : vector<7x128xf32> to vector<1x128xf32>
    %85 = vector.broadcast %84 : vector<1x128xf32> to vector<32x128xf32>
    %86 = arith.mulf %49, %85 : vector<32x128xf32>
    %87 = arith.addf %83, %86 : vector<32x128xf32>
    %c31_i32 = arith.constant 31 : i32
    %88 = tpu.dynamic_rotate %49 by %c31_i32 dim 0 : vector<32x128xf32>, i32 -> vector<32x128xf32>
    %c31_i32_27 = arith.constant 31 : i32
    %89 = vector.broadcast %c31_i32_27 : i32 to vector<32x1xi32>
    %90 = arith.cmpi slt, %2, %89 : vector<32x1xi32>
    %91 = arith.extui %90 : vector<32x1xi1> to vector<32x1xi32>
    %92 = arith.sitofp %91 : vector<32x1xi32> to vector<32x1xf32>
    %93 = vector.broadcast %92 : vector<32x1xf32> to vector<32x128xf32>
    %94 = arith.mulf %88, %93 : vector<32x128xf32>
    %95 = vector.extract_strided_slice %50 {offsets = [4, 0], sizes = [1, 128], strides = [1, 1]} : vector<7x128xf32> to vector<1x128xf32>
    %96 = vector.broadcast %95 : vector<1x128xf32> to vector<32x128xf32>
    %97 = arith.mulf %94, %96 : vector<32x128xf32>
    %98 = arith.addf %87, %97 : vector<32x128xf32>
    %c30_i32 = arith.constant 30 : i32
    %99 = tpu.dynamic_rotate %49 by %c30_i32 dim 0 : vector<32x128xf32>, i32 -> vector<32x128xf32>
    %c30_i32_28 = arith.constant 30 : i32
    %100 = vector.broadcast %c30_i32_28 : i32 to vector<32x1xi32>
    %101 = arith.cmpi slt, %2, %100 : vector<32x1xi32>
    %102 = arith.extui %101 : vector<32x1xi1> to vector<32x1xi32>
    %103 = arith.sitofp %102 : vector<32x1xi32> to vector<32x1xf32>
    %104 = vector.broadcast %103 : vector<32x1xf32> to vector<32x128xf32>
    %105 = arith.mulf %99, %104 : vector<32x128xf32>
    %106 = vector.extract_strided_slice %50 {offsets = [5, 0], sizes = [1, 128], strides = [1, 1]} : vector<7x128xf32> to vector<1x128xf32>
    %107 = vector.broadcast %106 : vector<1x128xf32> to vector<32x128xf32>
    %108 = arith.mulf %105, %107 : vector<32x128xf32>
    %109 = arith.addf %98, %108 : vector<32x128xf32>
    %c29_i32 = arith.constant 29 : i32
    %110 = tpu.dynamic_rotate %49 by %c29_i32 dim 0 : vector<32x128xf32>, i32 -> vector<32x128xf32>
    %c29_i32_29 = arith.constant 29 : i32
    %111 = vector.broadcast %c29_i32_29 : i32 to vector<32x1xi32>
    %112 = arith.cmpi slt, %2, %111 : vector<32x1xi32>
    %113 = arith.extui %112 : vector<32x1xi1> to vector<32x1xi32>
    %114 = arith.sitofp %113 : vector<32x1xi32> to vector<32x1xf32>
    %115 = vector.broadcast %114 : vector<32x1xf32> to vector<32x128xf32>
    %116 = arith.mulf %110, %115 : vector<32x128xf32>
    %117 = vector.extract_strided_slice %50 {offsets = [6, 0], sizes = [1, 128], strides = [1, 1]} : vector<7x128xf32> to vector<1x128xf32>
    %118 = vector.broadcast %117 : vector<1x128xf32> to vector<32x128xf32>
    %119 = arith.mulf %116, %118 : vector<32x128xf32>
    %120 = arith.addf %109, %119 : vector<32x128xf32>
    %121 = vector.broadcast %8 : vector<32x1xf32> to vector<32x128xf32>
    %122 = arith.mulf %120, %121 : vector<32x128xf32>
    %123 = arith.truncf %122 : vector<32x128xf32> to vector<32x128xbf16>
    %c0_30 = arith.constant 0 : index
    %c0_31 = arith.constant 0 : index
    %c0_32 = arith.constant 0 : index
    %124 = vector.load %arg10[%c0_30, %c0_31, %c0_32] : memref<1x32x128xbf16, #tpu.memory_space<vmem>>, vector<1x32x128xbf16>
    %125 = vector.shape_cast %124 : vector<1x32x128xbf16> to vector<32x128xbf16>
    %126 = vector.shape_cast %123 : vector<32x128xbf16> to vector<1x32x128xbf16>
    tpu.vector_store %arg10[%c0_30, %c0_31, %c0_32], %126 {strides = array<i32>} : memref<1x32x128xbf16, #tpu.memory_space<vmem>>, vector<1x32x128xbf16>,
    return
  }
  func.func @transform_0(%arg0: i32, %arg1: memref<2xi32, #tpu.memory_space<smem>>) -> (i32, i32, i32) {
    %c0_i32 = arith.constant 0 : i32
    %c0_i32_0 = arith.constant 0 : i32
    %c0_i32_1 = arith.constant 0 : i32
    return %arg0, %c0_i32, %c0_i32_0 : i32, i32, i32
  }
  func.func @transform_1(%arg0: i32, %arg1: memref<2xi32, #tpu.memory_space<smem>>) -> (i32, i32) {
    %c0_i32 = arith.constant 0 : i32
    %c0_i32_0 = arith.constant 0 : i32
    %c0_i32_1 = arith.constant 0 : i32
    return %c0_i32, %c0_i32_0 : i32, i32
  }
  func.func @transform_2(%arg0: i32, %arg1: memref<2xi32, #tpu.memory_space<smem>>) -> (i32, i32) {
    %c0_i32 = arith.constant 0 : i32
    %c0_i32_0 = arith.constant 0 : i32
    %c0_i32_1 = arith.constant 0 : i32
    return %c0_i32, %c0_i32_0 : i32, i32
  }
  func.func @transform_3(%arg0: i32, %arg1: memref<2xi32, #tpu.memory_space<smem>>) -> (i32, i32) {
    %c0_i32 = arith.constant 0 : i32
    %c0_i32_0 = arith.constant 0 : i32
    %c0_i32_1 = arith.constant 0 : i32
    return %c0_i32, %c0_i32_0 : i32, i32
  }
  func.func @transform_4(%arg0: i32, %arg1: memref<2xi32, #tpu.memory_space<smem>>) -> (i32, i32) {
    %c0_i32 = arith.constant 0 : i32
    %c0_i32_0 = arith.constant 0 : i32
    %c0_i32_1 = arith.constant 0 : i32
    return %c0_i32, %c0_i32_0 : i32, i32
  }
  func.func @transform_5(%arg0: i32, %arg1: memref<2xi32, #tpu.memory_space<smem>>) -> (i32, i32) {
    %c0_i32 = arith.constant 0 : i32
    %c0_i32_0 = arith.constant 0 : i32
    %c0_i32_1 = arith.constant 0 : i32
    return %c0_i32, %c0_i32_0 : i32, i32
  }
  func.func @transform_6(%arg0: i32, %arg1: memref<2xi32, #tpu.memory_space<smem>>) -> (i32, i32) {
    %c0_i32 = arith.constant 0 : i32
    %c0_i32_0 = arith.constant 0 : i32
    %c0_i32_1 = arith.constant 0 : i32
    return %c0_i32, %c0_i32_0 : i32, i32
  }
  func.func @transform_7(%arg0: i32, %arg1: memref<2xi32, #tpu.memory_space<smem>>) -> (i32, i32) {
    %c0_i32 = arith.constant 0 : i32
    %c0_i32_0 = arith.constant 0 : i32
    %c0_i32_1 = arith.constant 0 : i32
    return %c0_i32, %c0_i32_0 : i32, i32
  }
  func.func @transform_8(%arg0: i32, %arg1: memref<2xi32, #tpu.memory_space<smem>>) -> (i32, i32, i32) {
    %c0_i32 = arith.constant 0 : i32
    %c0_i32_0 = arith.constant 0 : i32
    %c0_i32_1 = arith.constant 0 : i32
    return %arg0, %c0_i32, %c0_i32_0 : i32, i32, i32
  }
}

</mosaic_0001>

<llo_original>
// kernel: tpu_custom_call.1
$region0: #{tpu_custom_call.1}
  #allocation0 [shape = 'u32[]', space=smem, size = 0x4, offset = 0x4, fixed_abs, tag = 'smem constant byte address 0x4 - core index']
  #allocation1 [shape = 'u32[144,128]{1,0:T(1,128)}', space=vmem, size = 0x12000, scoped, tag = 'internal scratch']
  #allocation2 [shape = 's32[1]{0}', space=sflag, size = 0x4, scoped, tag = 'scoped memory for tpu_custom_call.1']
  #allocation3 [shape = 'u8[512]{0}', space=smem, size = 0x200, scoped, tag = 'prefetched SMEM operand 0']
  %s0 = inlined_call_operand.hbm [shape: s32[2], index: 0, kind: input, shape index: {}]
  %s1 = inlined_call_operand.hbm [shape: bf16[2,32,128], index: 1, kind: input, shape index: {}]
  %s2 = inlined_call_operand.hbm [shape: bf16[128,128], index: 2, kind: input, shape index: {}]
  %s3 = inlined_call_operand.vmem [shape: f32[1,128], index: 3, kind: input, shape index: {}]
  %s4 = inlined_call_operand.vmem [shape: f32[1,128], index: 4, kind: input, shape index: {}]
  %s5 = inlined_call_operand.vmem [shape: f32[1,128], index: 5, kind: input, shape index: {}]
  %s6 = inlined_call_operand.hbm [shape: bf16[128,128], index: 6, kind: input, shape index: {}]
  %s7 = inlined_call_operand.vmem [shape: f32[1,128], index: 7, kind: input, shape index: {}]
  %s8 = inlined_call_operand.vmem [shape: f32[7,128], index: 8, kind: input, shape index: {}]
  %s9 = inlined_call_operand.hbm [shape: bf16[2,32,128], index: 9, kind: output, shape index: {}]
  %s10 = sld [smem:[#allocation0]]
  $region77: #{tpu_custom_call.1} parent=0
    _
  %s12 = ssub.s32 1, %s10
  %s13 = scalar_select 0, %s12, %s10
  %15 = dma.hbm_to_smem %s0, 16, [#allocation3], [#allocation2]
  %16 = dma.done [#allocation2], 16
  %17 = sfence
  $region1: #{tpu_custom_call.1} parent=0
    #allocation4 [shape = 'u8[16384]{0}', space=vmem, size = 0x4000, scoped, tag = 'input window, operand 1']
    #allocation5 [shape = 's32[2]{0}', space=sflag, size = 0x8, scoped, tag = 'scoped memory for tpu_custom_call.1']
    #allocation6 [shape = 's32[2]{0}', space=sflag, size = 0x8, scoped, tag = 'scoped memory for tpu_custom_call.1']
    #allocation7 [shape = 'u8[32768]{0}', space=vmem, size = 0x8000, scoped, tag = 'input window, operand 2, single buffered']
    #allocation8 [shape = 's32[1]{0}', space=sflag, size = 0x4, scoped, tag = 'scoped memory for tpu_custom_call.1']
    #allocation9 [shape = 'u8[32768]{0}', space=vmem, size = 0x8000, scoped, tag = 'input window, operand 6, single buffered']
    #allocation10 [shape = 'u8[16384]{0}', space=vmem, size = 0x4000, scoped, tag = 'output window, operand 0']
    %18 = vsyncpa [#allocation5], 0
    %s19 = scalar_lea.sflag [#allocation5], 1
    %20 = vsyncpa %s19, 0
    %21 = vsyncpa [#allocation8], 0
    %22 = vsyncpa [#allocation6], 0
    %s23 = scalar_lea.sflag [#allocation6], 1
    %24 = vsyncpa %s23, 0
    loop: start=0, step=1, limit=4
    $region2: #{tpu_custom_call.1} parent=1 // loop_pre_header
      _
    $region3: #{tpu_custom_call.1} parent=1 // loop_header
      %s26 = sphi 0, %s30
      %p27 = scmp.ge.s32.totalorder %s26, 4
      %s36 = sphi 0, %s38
      %s39 = sphi 0, %s36
      %s40 = sphi 0, %s39
      %s56 = sphi 0, %s40
      %s60 = sphi 0, %s60
      %s62 = sphi 0, %s60
      %s63 = sphi 0, %s62
      %s77 = sphi 0, %s63
      %s81 = sphi 0, %s81
      %s83 = sphi 0, %s81
      %s84 = sphi 0, %s83
      %s98 = sphi 0, %s84
      %s102 = sphi 0, %s102
      %s104 = sphi 0, %s102
      %s105 = sphi 0, %s104
      %s119 = sphi 0, %s105
      %s123 = sphi 0, %s123
      %s125 = sphi 0, %s123
      %s126 = sphi 0, %s125
      %s140 = sphi 0, %s126
      %s144 = sphi 0, %s144
      %s146 = sphi 0, %s144
      %s147 = sphi 0, %s146
      %s161 = sphi 0, %s147
      %s165 = sphi 0, %s165
      %s167 = sphi 0, %s165
      %s168 = sphi 0, %s167
      %s182 = sphi 0, %s168
      %s186 = sphi 0, %s186
      %s188 = sphi 0, %s186
      %s189 = sphi 0, %s188
      %s203 = sphi 0, %s189
      %s209 = sphi 0, %s211
      %s212 = sphi 0, %s209
      %s213 = sphi 0, %s212
      %s229 = sphi 0, %s213
    $region4: #{tpu_custom_call.1} parent=1 // loop_header_branch
      %29 = sbr.rel (%p27) target = $region8
    $region5: #{tpu_custom_call.1} parent=1 // loop_body
      %s31 = ssub.s32 %s26, 1
      %s32 = ssub.s32 %s26, 2
      %s33 = sadd.s32 %s26, 1
      %s34 = ssub.s32 %s26, %s33
      %p35 = scmp.eq.s32.totalorder %s34, 0
      %s37 = sadd.s32 %s36, 1
      %s38 = scalar_select %p35, %s36, %s37
      %p41 = pneg %p35
      %p42 = scmp.eq.s32.totalorder %s26, 1
      %p43 = por %p41, %p42
      %p44 = scmp.ne.s32.totalorder %s36, %s39
      %p45 = scmp.eq.s32.totalorder %s26, 0
      %p46 = por %p44, %p45
      %p47 = scmp.ne.s32.totalorder %s36, %s39
      %p48 = scmp.eq.s32.totalorder %s31, 1
      %p49 = por %p47, %p48
      %p50 = scmp.ne.s32.totalorder %s39, %s40
      %p51 = scmp.eq.s32.totalorder %s31, 0
      %p52 = por %p50, %p51
      %p53 = scmp.ne.s32.totalorder %s39, %s40
      %p54 = scmp.eq.s32.totalorder %s32, 1
      %p55 = por %p53, %p54
      %p57 = scmp.ne.s32.totalorder %s40, %s56
      %p58 = scmp.eq.s32.totalorder %s32, 0
      %p59 = por %p57, %p58
      %s61 = sadd.s32 %s60, 1
      %p64 = scmp.eq.s32.totalorder %s26, 1
      %p65 = scmp.ne.s32.totalorder %s60, %s62
      %p66 = scmp.eq.s32.totalorder %s26, 0
      %p67 = por %p65, %p66
      %p68 = scmp.ne.s32.totalorder %s60, %s62
      %p69 = scmp.eq.s32.totalorder %s31, 1
      %p70 = por %p68, %p69
      %p71 = scmp.ne.s32.totalorder %s62, %s63
      %p72 = scmp.eq.s32.totalorder %s31, 0
      %p73 = por %p71, %p72
      %p74 = scmp.ne.s32.totalorder %s62, %s63
      %p75 = scmp.eq.s32.totalorder %s32, 1
      %p76 = por %p74, %p75
      %p78 = scmp.ne.s32.totalorder %s63, %s77
      %p79 = scmp.eq.s32.totalorder %s32, 0
      %p80 = por %p78, %p79
      %s82 = sadd.s32 %s81, 1
      %p85 = scmp.eq.s32.totalorder %s26, 1
      %p86 = scmp.ne.s32.totalorder %s81, %s83
      %p87 = scmp.eq.s32.totalorder %s26, 0
      %p88 = por %p86, %p87
      %p89 = scmp.ne.s32.totalorder %s81, %s83
      %p90 = scmp.eq.s32.totalorder %s31, 1
      %p91 = por %p89, %p90
      %p92 = scmp.ne.s32.totalorder %s83, %s84
      %p93 = scmp.eq.s32.totalorder %s31, 0
      %p94 = por %p92, %p93
      %p95 = scmp.ne.s32.totalorder %s83, %s84
      %p96 = scmp.eq.s32.totalorder %s32, 1
      %p97 = por %p95, %p96
      %p99 = scmp.ne.s32.totalorder %s84, %s98
      %p100 = scmp.eq.s32.totalorder %s32, 0
      %p101 = por %p99, %p100
      %s103 = sadd.s32 %s102, 1
      %p106 = scmp.eq.s32.totalorder %s26, 1
      %p107 = scmp.ne.s32.totalorder %s102, %s104
      %p108 = scmp.eq.s32.totalorder %s26, 0
      %p109 = por %p107, %p108
      %p110 = scmp.ne.s32.totalorder %s102, %s104
      %p111 = scmp.eq.s32.totalorder %s31, 1
      %p112 = por %p110, %p111
      %p113 = scmp.ne.s32.totalorder %s104, %s105
      %p114 = scmp.eq.s32.totalorder %s31, 0
      %p115 = por %p113, %p114
      %p116 = scmp.ne.s32.totalorder %s104, %s105
      %p117 = scmp.eq.s32.totalorder %s32, 1
      %p118 = por %p116, %p117
      %p120 = scmp.ne.s32.totalorder %s105, %s119
      %p121 = scmp.eq.s32.totalorder %s32, 0
      %p122 = por %p120, %p121
      %s124 = sadd.s32 %s123, 1
      %p127 = scmp.eq.s32.totalorder %s26, 1
      %p128 = scmp.ne.s32.totalorder %s123, %s125
      %p129 = scmp.eq.s32.totalorder %s26, 0
      %p130 = por %p128, %p129
      %p131 = scmp.ne.s32.totalorder %s123, %s125
      %p132 = scmp.eq.s32.totalorder %s31, 1
      %p133 = por %p131, %p132
      %p134 = scmp.ne.s32.totalorder %s125, %s126
      %p135 = scmp.eq.s32.totalorder %s31, 0
      %p136 = por %p134, %p135
      %p137 = scmp.ne.s32.totalorder %s125, %s126
      %p138 = scmp.eq.s32.totalorder %s32, 1
      %p139 = por %p137, %p138
      %p141 = scmp.ne.s32.totalorder %s126, %s140
      %p142 = scmp.eq.s32.totalorder %s32, 0
      %p143 = por %p141, %p142
      %s145 = sadd.s32 %s144, 1
      %p148 = scmp.eq.s32.totalorder %s26, 1
      %p149 = scmp.ne.s32.totalorder %s144, %s146
      %p150 = scmp.eq.s32.totalorder %s26, 0
      %p151 = por %p149, %p150
      %p152 = scmp.ne.s32.totalorder %s144, %s146
      %p153 = scmp.eq.s32.totalorder %s31, 1
      %p154 = por %p152, %p153
      %p155 = scmp.ne.s32.totalorder %s146, %s147
      %p156 = scmp.eq.s32.totalorder %s31, 0
      %p157 = por %p155, %p156
      %p158 = scmp.ne.s32.totalorder %s146, %s147
      %p159 = scmp.eq.s32.totalorder %s32, 1
      %p160 = por %p158, %p159
      %p162 = scmp.ne.s32.totalorder %s147, %s161
      %p163 = scmp.eq.s32.totalorder %s32, 0
      %p164 = por %p162, %p163
      %s166 = sadd.s32 %s165, 1
      %p169 = scmp.eq.s32.totalorder %s26, 1
      %p170 = scmp.ne.s32.totalorder %s165, %s167
      %p171 = scmp.eq.s32.totalorder %s26, 0
      %p172 = por %p170, %p171
      %p173 = scmp.ne.s32.totalorder %s165, %s167
      %p174 = scmp.eq.s32.totalorder %s31, 1
      %p175 = por %p173, %p174
      %p176 = scmp.ne.s32.totalorder %s167, %s168
      %p177 = scmp.eq.s32.totalorder %s31, 0
      %p178 = por %p176, %p177
      %p179 = scmp.ne.s32.totalorder %s167, %s168
      %p180 = scmp.eq.s32.totalorder %s32, 1
      %p181 = por %p179, %p180
      %p183 = scmp.ne.s32.totalorder %s168, %s182
      %p184 = scmp.eq.s32.totalorder %s32, 0
      %p185 = por %p183, %p184
      %s187 = sadd.s32 %s186, 1
      %p190 = scmp.eq.s32.totalorder %s26, 1
      %p191 = scmp.ne.s32.totalorder %s186, %s188
      %p192 = scmp.eq.s32.totalorder %s26, 0
      %p193 = por %p191, %p192
      %p194 = scmp.ne.s32.totalorder %s186, %s188
      %p195 = scmp.eq.s32.totalorder %s31, 1
      %p196 = por %p194, %p195
      %p197 = scmp.ne.s32.totalorder %s188, %s189
      %p198 = scmp.eq.s32.totalorder %s31, 0
      %p199 = por %p197, %p198
      %p200 = scmp.ne.s32.totalorder %s188, %s189
      %p201 = scmp.eq.s32.totalorder %s32, 1
      %p202 = por %p200, %p201
      %p204 = scmp.ne.s32.totalorder %s189, %s203
      %p205 = scmp.eq.s32.totalorder %s32, 0
      %p206 = por %p204, %p205
      %s207 = ssub.s32 %s26, %s33
      %p208 = scmp.eq.s32.totalorder %s207, 0
      %s210 = sadd.s32 %s209, 1
      %s211 = scalar_select %p208, %s209, %s210
      %p214 = pneg %p208
      %p215 = scmp.eq.s32.totalorder %s26, 1
      %p216 = por %p214, %p215
      %p217 = scmp.ne.s32.totalorder %s209, %s212
      %p218 = scmp.eq.s32.totalorder %s26, 0
      %p219 = por %p217, %p218
      %p220 = scmp.ne.s32.totalorder %s209, %s212
      %p221 = scmp.eq.s32.totalorder %s31, 1
      %p222 = por %p220, %p221
      %p223 = scmp.ne.s32.totalorder %s212, %s213
      %p224 = scmp.eq.s32.totalorder %s31, 0
      %p225 = por %p223, %p224
      %p226 = scmp.ne.s32.totalorder %s212, %s213
      %p227 = scmp.eq.s32.totalorder %s32, 1
      %p228 = por %p226, %p227
      %p230 = scmp.ne.s32.totalorder %s213, %s229
      %p231 = scmp.eq.s32.totalorder %s32, 0
      %p232 = por %p230, %p231
      %p233 = scmp.le.s32.totalorder 1, %s26
      %p234 = scmp.lt.s32.totalorder %s26, 3
      %p235 = pnand %p233, %p234
      %p236 = pneg %p235
      // Predicated region
      $region9: #{tpu_custom_call.1} parent=5 // pred_check
        _
      $region10: #{tpu_custom_call.1} parent=5 // pred_check_branch
        %238 = sbr.rel (%p235) target = $region12
      $region11: #{tpu_custom_call.1} parent=5 // pred_region
        %s239 = ssub.s32 %s26, 1
        // Predicated region
        $region13: #{tpu_custom_call.1} parent=11 // pred_check
          %p240 = pneg %p73
        $region14: #{tpu_custom_call.1} parent=11 // pred_check_branch
          %242 = sbr.rel (%p240) target = $region16
        $region15: #{tpu_custom_call.1} parent=11 // pred_region
          %s244 = ssub.s32 1024, 1024
          %245 = vsyncadd [#allocation8], %s244
          %s246 = sshll.u32 [#allocation7], 4
          %s247 = int_to_ptr.vmem [resolvable:$true] %s246
          %252 = dma.hbm_to_vmem [thread:$0]  %s2, 1024, %s247, [#allocation8], 64, 64, 4
        $region16: #{tpu_custom_call.1} parent=11 // pred_fallthru
          _
        // Predicated region
        $region17: #{tpu_custom_call.1} parent=11 // pred_check
          %p253 = pneg %p94
        $region18: #{tpu_custom_call.1} parent=11 // pred_check_branch
          %255 = sbr.rel (%p253) target = $region20
        $region19: #{tpu_custom_call.1} parent=11 // pred_region
          _
        $region20: #{tpu_custom_call.1} parent=11 // pred_fallthru
          _
        // Predicated region
        $region21: #{tpu_custom_call.1} parent=11 // pred_check
          %p256 = pneg %p115
        $region22: #{tpu_custom_call.1} parent=11 // pred_check_branch
          %258 = sbr.rel (%p256) target = $region24
        $region23: #{tpu_custom_call.1} parent=11 // pred_region
          _
        $region24: #{tpu_custom_call.1} parent=11 // pred_fallthru
          _
        // Predicated region
        $region25: #{tpu_custom_call.1} parent=11 // pred_check
          %p259 = pneg %p136
        $region26: #{tpu_custom_call.1} parent=11 // pred_check_branch
          %261 = sbr.rel (%p259) target = $region28
        $region27: #{tpu_custom_call.1} parent=11 // pred_region
          _
        $region28: #{tpu_custom_call.1} parent=11 // pred_fallthru
          _
        // Predicated region
        $region29: #{tpu_custom_call.1} parent=11 // pred_check
          %p262 = pneg %p157
        $region30: #{tpu_custom_call.1} parent=11 // pred_check_branch
          %264 = sbr.rel (%p262) target = $region32
        $region31: #{tpu_custom_call.1} parent=11 // pred_region
          %s266 = ssub.s32 1024, 1024
          %267 = vsyncadd [#allocation8], %s266
          %s268 = sshll.u32 [#allocation9], 4
          %s269 = int_to_ptr.vmem [resolvable:$true] %s268
          %274 = dma.hbm_to_vmem [thread:$0]  %s6, 1024, %s269, [#allocation8], 64, 64, 4
        $region32: #{tpu_custom_call.1} parent=11 // pred_fallthru
          _
        // Predicated region
        $region33: #{tpu_custom_call.1} parent=11 // pred_check
          %p275 = pneg %p178
        $region34: #{tpu_custom_call.1} parent=11 // pred_check_branch
          %277 = sbr.rel (%p275) target = $region36
        $region35: #{tpu_custom_call.1} parent=11 // pred_region
          _
        $region36: #{tpu_custom_call.1} parent=11 // pred_fallthru
          _
        // Predicated region
        $region37: #{tpu_custom_call.1} parent=11 // pred_check
          %p278 = pneg %p199
        $region38: #{tpu_custom_call.1} parent=11 // pred_check_branch
          %280 = sbr.rel (%p278) target = $region40
        $region39: #{tpu_custom_call.1} parent=11 // pred_region
          _
        $region40: #{tpu_custom_call.1} parent=11 // pred_fallthru
          _
      $region12: #{tpu_custom_call.1} parent=5 // pred_fallthru
        _
      %p281 = scmp.lt.s32.totalorder %s26, 2
      // Predicated region
      $region41: #{tpu_custom_call.1} parent=5 // pred_check
        %p282 = pneg %p281
      $region42: #{tpu_custom_call.1} parent=5 // pred_check_branch
        %284 = sbr.rel (%p282) target = $region44
      $region43: #{tpu_custom_call.1} parent=5 // pred_region
        // Predicated region
        $region45: #{tpu_custom_call.1} parent=43 // pred_check
          %p285 = pneg %p46
        $region46: #{tpu_custom_call.1} parent=43 // pred_check_branch
          %287 = sbr.rel (%p285) target = $region48
        $region47: #{tpu_custom_call.1} parent=43 // pred_region
          %s288 = sand.u32 %s36, 1
          %s289 = scalar_lea.sflag [#allocation5], %s288
          %s290 = sand.u32 %s36, 1
          %s291 = smul.addr %s290, 16
          %s292 = scalar_lea.vmem [#allocation4], %s291
          %s294 = ssub.s32 256, 256
          %295 = vsyncadd %s289, %s294
          %s296 = smul.addr %s26, 4
          %s297 = smul.addr %s296, 64
          %s298 = scalar_lea.hbm %s1, %s297
          %s299 = sshll.u32 %s292, 4
          %s300 = int_to_ptr.vmem [resolvable:$true] %s299
          %305 = dma.hbm_to_vmem [thread:$0]  %s298, 256, %s300, %s289, 64, 64, 4
        $region48: #{tpu_custom_call.1} parent=43 // pred_fallthru
          _
      $region44: #{tpu_custom_call.1} parent=5 // pred_fallthru
        _
      %p306 = scmp.le.s32.totalorder 1, %s26
      %p307 = scmp.lt.s32.totalorder %s26, 3
      %p308 = pnand %p306, %p307
      %p309 = pneg %p308
      // Predicated region
      $region49: #{tpu_custom_call.1} parent=5 // pred_check
        _
      $region50: #{tpu_custom_call.1} parent=5 // pred_check_branch
        %311 = sbr.rel (%p308) target = $region52
      $region51: #{tpu_custom_call.1} parent=5 // pred_region
        %s312 = ssub.s32 %s26, 1
        %s313 = sand.u32 %s39, 1
        %s314 = scalar_lea.sflag [#allocation5], %s313
        %s315 = sand.u32 %s39, 1
        %s316 = smul.addr %s315, 16
        %s317 = scalar_lea.vmem [#allocation4], %s316
        // Predicated region
        $region53: #{tpu_custom_call.1} parent=51 // pred_check
          %p318 = pneg %p52
        $region54: #{tpu_custom_call.1} parent=51 // pred_check_branch
          %320 = sbr.rel (%p318) target = $region56
        $region55: #{tpu_custom_call.1} parent=51 // pred_region
          %321 = dma.done %s314, 256
        $region56: #{tpu_custom_call.1} parent=51 // pred_fallthru
          _
        // Predicated region
        $region57: #{tpu_custom_call.1} parent=51 // pred_check
          %p322 = pneg %p73
        $region58: #{tpu_custom_call.1} parent=51 // pred_check_branch
          %324 = sbr.rel (%p322) target = $region60
        $region59: #{tpu_custom_call.1} parent=51 // pred_region
          %325 = dma.done [#allocation8], 1024
        $region60: #{tpu_custom_call.1} parent=51 // pred_fallthru
          _
        // Predicated region
        $region61: #{tpu_custom_call.1} parent=51 // pred_check
          %p326 = pneg %p157
        $region62: #{tpu_custom_call.1} parent=51 // pred_check_branch
          %328 = sbr.rel (%p326) target = $region64
        $region63: #{tpu_custom_call.1} parent=51 // pred_region
          %329 = dma.done [#allocation8], 1024
        $region64: #{tpu_custom_call.1} parent=51 // pred_fallthru
          _
        %s330 = sand.u32 %s39, 1
        %s331 = scalar_lea.sflag [#allocation5], %s330
        %s332 = sand.u32 %s39, 1
        %s333 = smul.addr %s332, 16
        %s334 = scalar_lea.vmem [#allocation4], %s333
        %p335 = pneg %p52
        %p336 = pneg %p49
        %p337 = pneg %p73
        %p338 = pneg %p70
        %p339 = pneg %p94
        %p340 = pneg %p91
        %p341 = pneg %p115
        %p342 = pneg %p112
        %p343 = pneg %p136
        %p344 = pneg %p133
        %p345 = pneg %p157
        %p346 = pneg %p154
        %p347 = pneg %p178
        %p348 = pneg %p175
        %p349 = pneg %p199
        %p350 = pneg %p196
        %p351 = pneg %p225
        %p352 = pneg %p222
        %s353 = sand.u32 %s212, 1
        %s354 = scalar_lea.sflag [#allocation6], %s353
        %s355 = sand.u32 %s212, 1
        %s356 = smul.addr %s355, 16
        %s357 = scalar_lea.vmem [#allocation10], %s356
        %v359 = vld [vmem:[%s317] sm:$0xf]
        %v360 = vld [vmem:[%s317 + $0x4] sm:$0xf]
        %v361 = vld [vmem:[%s317 + $0x8] sm:$0xf]
        %v362 = vld [vmem:[%s317 + $0xc] sm:$0xf]
        %v363 = vlaneseq
        %v364 = vshrl.u32 %v363, 7
        %v365 = vadd.s32 %v364, 8
        %v366 = vadd.s32 %v364, 16
        %v367 = vadd.s32 %v364, 24
        %s368 = sld [smem:[#allocation3 + %s31]]
        %v369 = vstv %s368
        %vm370 = vcmp.lt.s32.totalorder %v364, %v369
        %vm371 = vcmp.lt.s32.totalorder %v365, %v369
        %vm372 = vcmp.lt.s32.totalorder %v366, %v369
        %vm373 = vcmp.lt.s32.totalorder %v367, %v369
        %v374 = vsel %vm370, 1, 0
        %v375 = vsel %vm371, 1, 0
        %v376 = vsel %vm372, 1, 0
        %v377 = vsel %vm373, 1, 0
        %v378 = vcvt.s32.f32 %v374
        %v379 = vcvt.s32.f32 %v375
        %v380 = vcvt.s32.f32 %v376
        %v381 = vcvt.s32.f32 %v377
        %v382 = vld [vmem:[#allocation7] sm:$0xf]
        %v383 = vld [vmem:[#allocation7 + $0x4] sm:$0xf]
        %v384 = vld [vmem:[#allocation7 + $0x8] sm:$0xf]
        %v385 = vld [vmem:[#allocation7 + $0xc] sm:$0xf]
        %v386 = vld [vmem:[#allocation7 + $0x10] sm:$0xf]
        %v387 = vld [vmem:[#allocation7 + $0x14] sm:$0xf]
        %v388 = vld [vmem:[#allocation7 + $0x18] sm:$0xf]
        %v389 = vld [vmem:[#allocation7 + $0x1c] sm:$0xf]
        %v390 = vld [vmem:[#allocation7 + $0x20] sm:$0xf]
        %v391 = vld [vmem:[#allocation7 + $0x24] sm:$0xf]
        %v392 = vld [vmem:[#allocation7 + $0x28] sm:$0xf]
        %v393 = vld [vmem:[#allocation7 + $0x2c] sm:$0xf]
        %v394 = vld [vmem:[#allocation7 + $0x30] sm:$0xf]
        %v395 = vld [vmem:[#allocation7 + $0x34] sm:$0xf]
        %v396 = vld [vmem:[#allocation7 + $0x38] sm:$0xf]
        %v397 = vld [vmem:[#allocation7 + $0x3c] sm:$0xf]
        %v398 = vld [vmem:[%s3] sm:$0x1]
        %v399 = vld [vmem:[%s4] sm:$0x1]
        %v400 = vld [vmem:[%s5] sm:$0x1]
        %v401 = vld [vmem:[#allocation9] sm:$0xf]
        %v402 = vld [vmem:[#allocation9 + $0x4] sm:$0xf]
        %v403 = vld [vmem:[#allocation9 + $0x8] sm:$0xf]
        %v404 = vld [vmem:[#allocation9 + $0xc] sm:$0xf]
        %v405 = vld [vmem:[#allocation9 + $0x10] sm:$0xf]
        %v406 = vld [vmem:[#allocation9 + $0x14] sm:$0xf]
        %v407 = vld [vmem:[#allocation9 + $0x18] sm:$0xf]
        %v408 = vld [vmem:[#allocation9 + $0x1c] sm:$0xf]
        %v409 = vld [vmem:[#allocation9 + $0x20] sm:$0xf]
        %v410 = vld [vmem:[#allocation9 + $0x24] sm:$0xf]
        %v411 = vld [vmem:[#allocation9 + $0x28] sm:$0xf]
        %v412 = vld [vmem:[#allocation9 + $0x2c] sm:$0xf]
        %v413 = vld [vmem:[#allocation9 + $0x30] sm:$0xf]
        %v414 = vld [vmem:[#allocation9 + $0x34] sm:$0xf]
        %v415 = vld [vmem:[#allocation9 + $0x38] sm:$0xf]
        %v416 = vld [vmem:[#allocation9 + $0x3c] sm:$0xf]
        %v417 = vld [vmem:[%s7] sm:$0x1]
        %v419 = vlaneseq
        %v420 = vshrl.u32 %v419, 7
        %v421 = vsub.s32 0, %v420
        %v422 = vrot.slane %v398, %v421
        %v428 = vunpack.c.l.b16 %v359
        %v429 = vunpack.c.l.b16 %v360
        %v430 = vunpack.c.l.b16 %v361
        %v431 = vunpack.c.l.b16 %v362
        %v432 = vpack.c.b16 %v429, %v428
        %v433 = vpack.c.b16 %v431, %v430
        %v452 = vunpack.c.l.b16 %v382
        %v453 = vunpack.c.l.b16 %v383
        %v454 = vunpack.c.l.b16 %v384
        %v455 = vunpack.c.l.b16 %v385
        %v456 = vunpack.c.l.b16 %v386
        %v457 = vunpack.c.l.b16 %v387
        %v458 = vunpack.c.l.b16 %v388
        %v459 = vunpack.c.l.b16 %v389
        %v460 = vunpack.c.l.b16 %v390
        %v461 = vunpack.c.l.b16 %v391
        %v462 = vunpack.c.l.b16 %v392
        %v463 = vunpack.c.l.b16 %v393
        %v464 = vunpack.c.l.b16 %v394
        %v465 = vunpack.c.l.b16 %v395
        %v466 = vunpack.c.l.b16 %v396
        %v467 = vunpack.c.l.b16 %v397
        %v468 = vpack.c.b16 %v453, %v452
        %v469 = vpack.c.b16 %v455, %v454
        %v470 = vpack.c.b16 %v457, %v456
        %v471 = vpack.c.b16 %v459, %v458
        %v472 = vpack.c.b16 %v461, %v460
        %v473 = vpack.c.b16 %v463, %v462
        %v474 = vpack.c.b16 %v465, %v464
        %v475 = vpack.c.b16 %v467, %v466
        %484 = vmatprep.subr.bf16.mxu0 0
        %485 = vmatpush1.bf16.msra.mxu0 %v468
        %486 = vmatprep.subr.bf16.mxu0 0
        %487 = vmatpush1.bf16.msra.mxu0 %v469
        %488 = vmatprep.subr.bf16.mxu0 0
        %489 = vmatpush1.bf16.msra.mxu0 %v470
        %490 = vmatprep.subr.bf16.mxu0 0
        %491 = vmatpush1.bf16.msra.mxu0 %v471
        %492 = vmatprep.subr.bf16.mxu0 0
        %493 = vmatpush1.bf16.msra.mxu0 %v472
        %494 = vmatprep.subr.bf16.mxu0 0
        %495 = vmatpush1.bf16.msra.mxu0 %v473
        %496 = vmatprep.subr.bf16.mxu0 0
        %497 = vmatpush1.bf16.msra.mxu0 %v474
        %498 = vmatprep.subr.bf16.mxu0 0
        %499 = vmatpush1.bf16.msra.mxu0 %v475
        %500 = vmatprep.subr.bf16.mxu0 0
        %501 = vmatpush1.bf16.msra.mxu0 0
        %502 = vmatprep.subr.bf16.mxu0 0
        %503 = vmatpush1.bf16.msra.mxu0 0
        %504 = vmatprep.subr.bf16.mxu0 0
        %505 = vmatpush1.bf16.msra.mxu0 0
        %506 = vmatprep.subr.bf16.mxu0 0
        %507 = vmatpush1.bf16.msra.mxu0 0
        %508 = vmatprep.subr.bf16.mxu0 0
        %509 = vmatpush1.bf16.msra.mxu0 0
        %510 = vmatprep.subr.bf16.mxu0 0
        %511 = vmatpush1.bf16.msra.mxu0 0
        %512 = vmatprep.subr.bf16.mxu0 0
        %513 = vmatpush1.bf16.msra.mxu0 0
        %514 = vmatprep.subr.bf16.mxu0 0
        %515 = vmatpush1.bf16.msra.mxu0 0
        %516 = vmatprep.mubr.bf16.mxu0 0
        %517 = vmatmul.mubr.bf16.gmra.mrb[0].mxu0 %v432
        %v518 = vpop.f32.mrb[0].mxu0
        %v519 = vadd.f32 %v422, %v518
        %v520 = vpop.f32.mrb[0].mxu0
        %v521 = vpop.f32.mrb[0].mxu0
        %v522 = vadd.f32 %v422, %v521
        %v523 = vpop.f32.mrb[0].mxu0
        %524 = vmatprep.mubr.bf16.mxu0 0
        %525 = vmatmul.mubr.bf16.gmra.mrb[0].mxu0 %v433
        %v526 = vpop.f32.mrb[0].mxu0
        %v527 = vadd.f32 %v422, %v526
        %v528 = vpop.f32.mrb[0].mxu0
        %v529 = vpop.f32.mrb[0].mxu0
        %v530 = vadd.f32 %v422, %v529
        %v531 = vpop.f32.mrb[0].mxu0
        %532 = vdwg.mxu0
        %533 = vadd.xlane.f32.xlu0 %v519
        %v534 = vpop.xlane.xlu0 %533
        %535 = vadd.xlane.f32.xlu0 %v522
        %v536 = vpop.xlane.xlu0 %535
        %537 = vadd.xlane.f32.xlu0 %v527
        %v538 = vpop.xlane.xlu0 %537
        %539 = vadd.xlane.f32.xlu0 %v530
        %v540 = vpop.xlane.xlu0 %539
        %v541 = vmul.f32 %v534, 0.010416667
        %v542 = vmul.f32 %v536, 0.010416667
        %v543 = vmul.f32 %v538, 0.010416667
        %v544 = vmul.f32 %v540, 0.010416667
        %v545 = vsub.f32 %v519, %v541
        %v546 = vsub.f32 %v522, %v542
        %v547 = vsub.f32 %v527, %v543
        %v548 = vsub.f32 %v530, %v544
        %v549 = vmul.f32 %v545, %v545
        %v550 = vmul.f32 %v546, %v546
        %v551 = vmul.f32 %v547, %v547
        %v552 = vmul.f32 %v548, %v548
        %553 = vadd.xlane.f32.xlu0 %v549
        %v554 = vpop.xlane.xlu0 %553
        %555 = vadd.xlane.f32.xlu0 %v550
        %v556 = vpop.xlane.xlu0 %555
        %557 = vadd.xlane.f32.xlu0 %v551
        %v558 = vpop.xlane.xlu0 %557
        %559 = vadd.xlane.f32.xlu0 %v552
        %v560 = vpop.xlane.xlu0 %559
        %v561 = vmul.f32 %v541, 32.0
        %v562 = vmul.f32 %v542, 32.0
        %v563 = vmul.f32 %v543, 32.0
        %v564 = vmul.f32 %v544, 32.0
        %v565 = vmul.f32 %v561, %v541
        %v566 = vmul.f32 %v562, %v542
        %v567 = vmul.f32 %v563, %v543
        %v568 = vmul.f32 %v564, %v544
        %v569 = vsub.f32 %v554, %v565
        %v570 = vsub.f32 %v556, %v566
        %v571 = vsub.f32 %v558, %v567
        %v572 = vsub.f32 %v560, %v568
        %v573 = vmul.f32 %v569, 0.010416667
        %v574 = vmul.f32 %v570, 0.010416667
        %v575 = vmul.f32 %v571, 0.010416667
        %v576 = vmul.f32 %v572, 0.010416667
        %v577 = vadd.f32 %v573, 1e-05
        %v578 = vadd.f32 %v574, 1e-05
        %v579 = vadd.f32 %v575, 1e-05
        %v580 = vadd.f32 %v576, 1e-05
        %v581 = vrsqrt.pop %v577
        %v582 = vrsqrt.pop %v578
        %v583 = vrsqrt.pop %v579
        %v584 = vrsqrt.pop %v580
        %v585 = vmul.f32 %v545, %v581
        %v586 = vmul.f32 %v546, %v582
        %v587 = vmul.f32 %v547, %v583
        %v588 = vmul.f32 %v548, %v584
        %v590 = vlaneseq
        %v591 = vshrl.u32 %v590, 7
        %v592 = vsub.s32 0, %v591
        %v593 = vrot.slane %v399, %v592
        %v595 = vmul.f32 %v585, %v593
        %v596 = vmul.f32 %v586, %v593
        %v597 = vmul.f32 %v587, %v593
        %v598 = vmul.f32 %v588, %v593
        %v600 = vlaneseq
        %v601 = vshrl.u32 %v600, 7
        %v602 = vsub.s32 0, %v601
        %v603 = vrot.slane %v400, %v602
        %v605 = vadd.f32 %v595, %v603
        %v606 = vadd.f32 %v596, %v603
        %v607 = vadd.f32 %v597, %v603
        %v608 = vadd.f32 %v598, %v603
        %v609 = vmax.f32 %v605, 0.0
        %v610 = vmax.f32 %v606, 0.0
        %v611 = vmax.f32 %v607, 0.0
        %v612 = vmax.f32 %v608, 0.0
        %v613 = vpack.c.bf16 %v610, %v609
        %v614 = vpack.c.bf16 %v612, %v611
        %v616 = vlaneseq
        %v617 = vshrl.u32 %v616, 7
        %v618 = vsub.s32 0, %v617
        %v619 = vrot.slane %v417, %v618
        %v637 = vunpack.c.l.b16 %v401
        %v638 = vunpack.c.l.b16 %v402
        %v639 = vunpack.c.l.b16 %v403
        %v640 = vunpack.c.l.b16 %v404
        %v641 = vunpack.c.l.b16 %v405
        %v642 = vunpack.c.l.b16 %v406
        %v643 = vunpack.c.l.b16 %v407
        %v644 = vunpack.c.l.b16 %v408
        %v645 = vunpack.c.l.b16 %v409
        %v646 = vunpack.c.l.b16 %v410
        %v647 = vunpack.c.l.b16 %v411
        %v648 = vunpack.c.l.b16 %v412
        %v649 = vunpack.c.l.b16 %v413
        %v650 = vunpack.c.l.b16 %v414
        %v651 = vunpack.c.l.b16 %v415
        %v652 = vunpack.c.l.b16 %v416
        %v653 = vpack.c.b16 %v638, %v637
        %v654 = vpack.c.b16 %v640, %v639
        %v655 = vpack.c.b16 %v642, %v641
        %v656 = vpack.c.b16 %v644, %v643
        %v657 = vpack.c.b16 %v646, %v645
        %v658 = vpack.c.b16 %v648, %v647
        %v659 = vpack.c.b16 %v650, %v649
        %v660 = vpack.c.b16 %v652, %v651
        %669 = vmatprep.subr.bf16.mxu0 0
        %670 = vmatpush1.bf16.msra.mxu0 %v653
        %671 = vmatprep.subr.bf16.mxu0 0
        %672 = vmatpush1.bf16.msra.mxu0 %v654
        %673 = vmatprep.subr.bf16.mxu0 0
        %674 = vmatpush1.bf16.msra.mxu0 %v655
        %675 = vmatprep.subr.bf16.mxu0 0
        %676 = vmatpush1.bf16.msra.mxu0 %v656
        %677 = vmatprep.subr.bf16.mxu0 0
        %678 = vmatpush1.bf16.msra.mxu0 %v657
        %679 = vmatprep.subr.bf16.mxu0 0
        %680 = vmatpush1.bf16.msra.mxu0 %v658
        %681 = vmatprep.subr.bf16.mxu0 0
        %682 = vmatpush1.bf16.msra.mxu0 %v659
        %683 = vmatprep.subr.bf16.mxu0 0
        %684 = vmatpush1.bf16.msra.mxu0 %v660
        %685 = vmatprep.subr.bf16.mxu0 0
        %686 = vmatpush1.bf16.msra.mxu0 0
        %687 = vmatprep.subr.bf16.mxu0 0
        %688 = vmatpush1.bf16.msra.mxu0 0
        %689 = vmatprep.subr.bf16.mxu0 0
        %690 = vmatpush1.bf16.msra.mxu0 0
        %691 = vmatprep.subr.bf16.mxu0 0
        %692 = vmatpush1.bf16.msra.mxu0 0
        %693 = vmatprep.subr.bf16.mxu0 0
        %694 = vmatpush1.bf16.msra.mxu0 0
        %695 = vmatprep.subr.bf16.mxu0 0
        %696 = vmatpush1.bf16.msra.mxu0 0
        %697 = vmatprep.subr.bf16.mxu0 0
        %698 = vmatpush1.bf16.msra.mxu0 0
        %699 = vmatprep.subr.bf16.mxu0 0
        %700 = vmatpush1.bf16.msra.mxu0 0
        %701 = vmatprep.mubr.bf16.mxu0 0
        %702 = vmatmul.mubr.bf16.gmra.mrb[0].mxu0 %v613
        %v703 = vpop.f32.mrb[0].mxu0
        %v704 = vadd.f32 %v619, %v703
        %v705 = vpop.f32.mrb[0].mxu0
        %v706 = vpop.f32.mrb[0].mxu0
        %v707 = vadd.f32 %v619, %v706
        %v708 = vpop.f32.mrb[0].mxu0
        %709 = vmatprep.mubr.bf16.mxu0 0
        %710 = vmatmul.mubr.bf16.gmra.mrb[0].mxu0 %v614
        %v711 = vpop.f32.mrb[0].mxu0
        %v712 = vadd.f32 %v619, %v711
        %v713 = vpop.f32.mrb[0].mxu0
        %v714 = vpop.f32.mrb[0].mxu0
        %v715 = vadd.f32 %v619, %v714
        %v716 = vpop.f32.mrb[0].mxu0
        %717 = vdwg.mxu0
        %v718 = vmul.f32 %v704, %v378
        %v719 = vmul.f32 %v707, %v379
        %v720 = vmul.f32 %v712, %v380
        %v721 = vmul.f32 %v715, %v381
        %v722 = vld [vmem:[%s8] sm:$0x7f]
        %v723 = vrot.slane %v718, 5
        %v724 = vrot.slane %v719, 5
        %v725 = vrot.slane %v720, 5
        %v726 = vrot.slane %v721, 5
        %vm727 = vcmp.lt.s32.totalorder %v364, 3
        %v728 = vsel %vm727, %v725, %v726
        %v729 = vsel %vm727, %v724, %v725
        %v730 = vsel %vm727, %v723, %v724
        %v731 = vsel %vm727, %v726, %v723
        %vm732 = vcmp.ge.s32.totalorder %v364, 3
        %vm733 = vcmp.ge.s32.totalorder %v365, 3
        %vm734 = vcmp.ge.s32.totalorder %v366, 3
        %vm735 = vcmp.ge.s32.totalorder %v367, 3
        %v736 = vsel %vm732, 1, 0
        %v737 = vsel %vm733, 1, 0
        %v738 = vsel %vm734, 1, 0
        %v739 = vsel %vm735, 1, 0
        %v740 = vcvt.s32.f32 %v736
        %v741 = vcvt.s32.f32 %v737
        %v742 = vcvt.s32.f32 %v738
        %v743 = vcvt.s32.f32 %v739
        %v744 = vmul.f32 %v731, %v740
        %v745 = vmul.f32 %v730, %v741
        %v746 = vmul.f32 %v729, %v742
        %v747 = vmul.f32 %v728, %v743
        %v748 = vlaneseq
        %v749 = vshrl.u32 %v748, 7
        %v750 = vsub.s32 0, %v749
        %v751 = vrot.slane %v722, %v750
        %v752 = vmul.f32 %v744, %v751
        %v753 = vmul.f32 %v745, %v751
        %v754 = vmul.f32 %v746, %v751
        %v755 = vmul.f32 %v747, %v751
        %v756 = vadd.f32 %v718, %v752
        %v757 = vadd.f32 %v719, %v753
        %v758 = vadd.f32 %v720, %v754
        %v759 = vadd.f32 %v721, %v755
        %v760 = vrot.slane %v718, 6
        %v761 = vrot.slane %v719, 6
        %v762 = vrot.slane %v720, 6
        %v763 = vrot.slane %v721, 6
        %vm764 = vcmp.lt.s32.totalorder %v364, 2
        %v765 = vsel %vm764, %v762, %v763
        %v766 = vsel %vm764, %v761, %v762
        %v767 = vsel %vm764, %v760, %v761
        %v768 = vsel %vm764, %v763, %v760
        %vm769 = vcmp.ge.s32.totalorder %v364, 2
        %vm770 = vcmp.ge.s32.totalorder %v365, 2
        %vm771 = vcmp.ge.s32.totalorder %v366, 2
        %vm772 = vcmp.ge.s32.totalorder %v367, 2
        %v773 = vsel %vm769, 1, 0
        %v774 = vsel %vm770, 1, 0
        %v775 = vsel %vm771, 1, 0
        %v776 = vsel %vm772, 1, 0
        %v777 = vcvt.s32.f32 %v773
        %v778 = vcvt.s32.f32 %v774
        %v779 = vcvt.s32.f32 %v775
        %v780 = vcvt.s32.f32 %v776
        %v781 = vmul.f32 %v768, %v777
        %v782 = vmul.f32 %v767, %v778
        %v783 = vmul.f32 %v766, %v779
        %v784 = vmul.f32 %v765, %v780
        %v785 = vlaneseq
        %v786 = vshrl.u32 %v785, 7
        %v787 = vsub.s32 1, %v786
        %v788 = vrot.slane %v722, %v787
        %v789 = vmul.f32 %v781, %v788
        %v790 = vmul.f32 %v782, %v788
        %v791 = vmul.f32 %v783, %v788
        %v792 = vmul.f32 %v784, %v788
        %v793 = vadd.f32 %v756, %v789
        %v794 = vadd.f32 %v757, %v790
        %v795 = vadd.f32 %v758, %v791
        %v796 = vadd.f32 %v759, %v792
        %v797 = vrot.slane %v718, 7
        %v798 = vrot.slane %v719, 7
        %v799 = vrot.slane %v720, 7
        %v800 = vrot.slane %v721, 7
        %vm801 = vcmp.lt.s32.totalorder %v364, 1
        %v802 = vsel %vm801, %v799, %v800
        %v803 = vsel %vm801, %v798, %v799
        %v804 = vsel %vm801, %v797, %v798
        %v805 = vsel %vm801, %v800, %v797
        %vm806 = vcmp.ge.s32.totalorder %v364, 1
        %vm807 = vcmp.ge.s32.totalorder %v365, 1
        %vm808 = vcmp.ge.s32.totalorder %v366, 1
        %vm809 = vcmp.ge.s32.totalorder %v367, 1
        %v810 = vsel %vm806, 1, 0
        %v811 = vsel %vm807, 1, 0
        %v812 = vsel %vm808, 1, 0
        %v813 = vsel %vm809, 1, 0
        %v814 = vcvt.s32.f32 %v810
        %v815 = vcvt.s32.f32 %v811
        %v816 = vcvt.s32.f32 %v812
        %v817 = vcvt.s32.f32 %v813
        %v818 = vmul.f32 %v805, %v814
        %v819 = vmul.f32 %v804, %v815
        %v820 = vmul.f32 %v803, %v816
        %v821 = vmul.f32 %v802, %v817
        %v822 = vlaneseq
        %v823 = vshrl.u32 %v822, 7
        %v824 = vsub.s32 2, %v823
        %v825 = vrot.slane %v722, %v824
        %v826 = vmul.f32 %v818, %v825
        %v827 = vmul.f32 %v819, %v825
        %v828 = vmul.f32 %v820, %v825
        %v829 = vmul.f32 %v821, %v825
        %v830 = vadd.f32 %v793, %v826
        %v831 = vadd.f32 %v794, %v827
        %v832 = vadd.f32 %v795, %v828
        %v833 = vadd.f32 %v796, %v829
        %v834 = vlaneseq
        %v835 = vshrl.u32 %v834, 7
        %v836 = vsub.s32 3, %v835
        %v837 = vrot.slane %v722, %v836
        %v838 = vmul.f32 %v718, %v837
        %v839 = vmul.f32 %v719, %v837
        %v840 = vmul.f32 %v720, %v837
        %v841 = vmul.f32 %v721, %v837
        %v842 = vadd.f32 %v830, %v838
        %v843 = vadd.f32 %v831, %v839
        %v844 = vadd.f32 %v832, %v840
        %v845 = vadd.f32 %v833, %v841
        %v846 = vrot.slane %v718, 1
        %v847 = vrot.slane %v719, 1
        %v848 = vrot.slane %v720, 1
        %v849 = vrot.slane %v721, 1
        %vm850 = vcmp.lt.s32.totalorder %v364, 7
        %v851 = vsel %vm850, %v848, %v849
        %v852 = vsel %vm850, %v847, %v848
        %v853 = vsel %vm850, %v846, %v847
        %v854 = vsel %vm850, %v849, %v846
        %vm855 = vcmp.lt.s32.totalorder %v364, 31
        %vm856 = vcmp.lt.s32.totalorder %v365, 31
        %vm857 = vcmp.lt.s32.totalorder %v366, 31
        %vm858 = vcmp.lt.s32.totalorder %v367, 31
        %v859 = vsel %vm855, 1, 0
        %v860 = vsel %vm856, 1, 0
        %v861 = vsel %vm857, 1, 0
        %v862 = vsel %vm858, 1, 0
        %v863 = vcvt.s32.f32 %v859
        %v864 = vcvt.s32.f32 %v860
        %v865 = vcvt.s32.f32 %v861
        %v866 = vcvt.s32.f32 %v862
        %v867 = vmul.f32 %v853, %v863
        %v868 = vmul.f32 %v852, %v864
        %v869 = vmul.f32 %v851, %v865
        %v870 = vmul.f32 %v854, %v866
        %v871 = vlaneseq
        %v872 = vshrl.u32 %v871, 7
        %v873 = vsub.s32 4, %v872
        %v874 = vrot.slane %v722, %v873
        %v875 = vmul.f32 %v867, %v874
        %v876 = vmul.f32 %v868, %v874
        %v877 = vmul.f32 %v869, %v874
        %v878 = vmul.f32 %v870, %v874
        %v879 = vadd.f32 %v842, %v875
        %v880 = vadd.f32 %v843, %v876
        %v881 = vadd.f32 %v844, %v877
        %v882 = vadd.f32 %v845, %v878
        %v883 = vrot.slane %v718, 2
        %v884 = vrot.slane %v719, 2
        %v885 = vrot.slane %v720, 2
        %v886 = vrot.slane %v721, 2
        %vm887 = vcmp.lt.s32.totalorder %v364, 6
        %v888 = vsel %vm887, %v885, %v886
        %v889 = vsel %vm887, %v884, %v885
        %v890 = vsel %vm887, %v883, %v884
        %v891 = vsel %vm887, %v886, %v883
        %vm892 = vcmp.lt.s32.totalorder %v364, 30
        %vm893 = vcmp.lt.s32.totalorder %v365, 30
        %vm894 = vcmp.lt.s32.totalorder %v366, 30
        %vm895 = vcmp.lt.s32.totalorder %v367, 30
        %v896 = vsel %vm892, 1, 0
        %v897 = vsel %vm893, 1, 0
        %v898 = vsel %vm894, 1, 0
        %v899 = vsel %vm895, 1, 0
        %v900 = vcvt.s32.f32 %v896
        %v901 = vcvt.s32.f32 %v897
        %v902 = vcvt.s32.f32 %v898
        %v903 = vcvt.s32.f32 %v899
        %v904 = vmul.f32 %v890, %v900
        %v905 = vmul.f32 %v889, %v901
        %v906 = vmul.f32 %v888, %v902
        %v907 = vmul.f32 %v891, %v903
        %v908 = vlaneseq
        %v909 = vshrl.u32 %v908, 7
        %v910 = vsub.s32 5, %v909
        %v911 = vrot.slane %v722, %v910
        %v912 = vmul.f32 %v904, %v911
        %v913 = vmul.f32 %v905, %v911
        %v914 = vmul.f32 %v906, %v911
        %v915 = vmul.f32 %v907, %v911
        %v916 = vadd.f32 %v879, %v912
        %v917 = vadd.f32 %v880, %v913
        %v918 = vadd.f32 %v881, %v914
        %v919 = vadd.f32 %v882, %v915
        %v920 = vrot.slane %v718, 3
        %v921 = vrot.slane %v719, 3
        %v922 = vrot.slane %v720, 3
        %v923 = vrot.slane %v721, 3
        %vm924 = vcmp.lt.s32.totalorder %v364, 5
        %v925 = vsel %vm924, %v922, %v923
        %v926 = vsel %vm924, %v921, %v922
        %v927 = vsel %vm924, %v920, %v921
        %v928 = vsel %vm924, %v923, %v920
        %vm929 = vcmp.lt.s32.totalorder %v364, 29
        %vm930 = vcmp.lt.s32.totalorder %v365, 29
        %vm931 = vcmp.lt.s32.totalorder %v366, 29
        %vm932 = vcmp.lt.s32.totalorder %v367, 29
        %v933 = vsel %vm929, 1, 0
        %v934 = vsel %vm930, 1, 0
        %v935 = vsel %vm931, 1, 0
        %v936 = vsel %vm932, 1, 0
        %v937 = vcvt.s32.f32 %v933
        %v938 = vcvt.s32.f32 %v934
        %v939 = vcvt.s32.f32 %v935
        %v940 = vcvt.s32.f32 %v936
        %v941 = vmul.f32 %v927, %v937
        %v942 = vmul.f32 %v926, %v938
        %v943 = vmul.f32 %v925, %v939
        %v944 = vmul.f32 %v928, %v940
        %v945 = vlaneseq
        %v946 = vshrl.u32 %v945, 7
        %v947 = vsub.s32 6, %v946
        %v948 = vrot.slane %v722, %v947
        %v949 = vmul.f32 %v941, %v948
        %v950 = vmul.f32 %v942, %v948
        %v951 = vmul.f32 %v943, %v948
        %v952 = vmul.f32 %v944, %v948
        %v953 = vadd.f32 %v916, %v949
        %v954 = vadd.f32 %v917, %v950
        %v955 = vadd.f32 %v918, %v951
        %v956 = vadd.f32 %v919, %v952
        %v957 = vmul.f32 %v953, %v378
        %v958 = vmul.f32 %v954, %v379
        %v959 = vmul.f32 %v955, %v380
        %v960 = vmul.f32 %v956, %v381
        %v961 = vpack.c.bf16 %v958, %v957
        %v962 = vpack.c.bf16 %v960, %v959
        %v965 = vunpack.c.l.b16 %v961
        %v966 = vunpack.c.h.b16 %v961
        %v967 = vunpack.c.l.b16 %v962
        %v968 = vunpack.c.h.b16 %v962
        %v969 = vpack.c.b16 %v965, %v965
        %v970 = vpack.c.b16 %v966, %v966
        %v971 = vpack.c.b16 %v967, %v967
        %v972 = vpack.c.b16 %v968, %v968
        %977 = vst [vmem:[%s357] sm:$0xf] %v969
        %978 = vst [vmem:[%s357 + $0x4] sm:$0xf] %v970
        %979 = vst [vmem:[%s357 + $0x8] sm:$0xf] %v971
        %980 = vst [vmem:[%s357 + $0xc] sm:$0xf] %v972
        %s981 = sand.u32 %s212, 1
        %s982 = scalar_lea.sflag [#allocation6], %s981
        %s983 = sand.u32 %s212, 1
        %s984 = smul.addr %s983, 16
        %s985 = scalar_lea.vmem [#allocation10], %s984
        // Predicated region
        $region65: #{tpu_custom_call.1} parent=51 // pred_check
          %p986 = pneg %p222
        $region66: #{tpu_custom_call.1} parent=51 // pred_check_branch
          %988 = sbr.rel (%p986) target = $region68
        $region67: #{tpu_custom_call.1} parent=51 // pred_region
          %s990 = ssub.s32 256, 256
          %991 = vsyncadd %s982, %s990
          %s992 = smul.addr %s31, 4
          %s993 = smul.addr %s992, 64
          %s994 = scalar_lea.hbm %s9, %s993
          %s995 = sshll.u32 %s985, 4
          %s996 = int_to_ptr.vmem [resolvable:$true] %s995
          %1001 = dma.vmem_to_hbm [thread:$0]  %s996, 256, %s994, %s982, 64, 64, 4
        $region68: #{tpu_custom_call.1} parent=51 // pred_fallthru
          _
      $region52: #{tpu_custom_call.1} parent=5 // pred_fallthru
        _
      %p1002 = scmp.le.s32.totalorder 2, %s26
      // Predicated region
      $region69: #{tpu_custom_call.1} parent=5 // pred_check
        %p1003 = pneg %p1002
      $region70: #{tpu_custom_call.1} parent=5 // pred_check_branch
        %1005 = sbr.rel (%p1003) target = $region72
      $region71: #{tpu_custom_call.1} parent=5 // pred_region
        %s1006 = ssub.s32 %s26, 2
        // Predicated region
        $region73: #{tpu_custom_call.1} parent=71 // pred_check
          %p1007 = pneg %p228
        $region74: #{tpu_custom_call.1} parent=71 // pred_check_branch
          %1009 = sbr.rel (%p1007) target = $region76
        $region75: #{tpu_custom_call.1} parent=71 // pred_region
          %s1010 = sand.u32 %s213, 1
          %s1011 = scalar_lea.sflag [#allocation6], %s1010
          %s1012 = sand.u32 %s213, 1
          %s1013 = smul.addr %s1012, 16
          %s1014 = scalar_lea.vmem [#allocation10], %s1013
          %1015 = dma.done %s1011, 256
        $region76: #{tpu_custom_call.1} parent=71 // pred_fallthru
          _
      $region72: #{tpu_custom_call.1} parent=5 // pred_fallthru
        _
    $region6: #{tpu_custom_call.1} parent=1 // loop_footer
      %s30 = sadd.s32 1, %s26
    $region7: #{tpu_custom_call.1} parent=1 // loop_footer_branch
      %25 = sbr.rel target = $region3
    $region8: #{tpu_custom_call.1} parent=1 // loop_exit
      _
    %1016 = vsyncpa [#allocation5], 1
    %s1017 = scalar_lea.sflag [#allocation5], 1
    %1018 = vsyncpa %s1017, 1
    %1019 = vsyncpa [#allocation8], 1
    %1020 = vsyncpa [#allocation6], 1
    %s1021 = scalar_lea.sflag [#allocation6], 1
    %1022 = vsyncpa %s1021, 1

</llo_original>
